<compile_context>
chip_gen: v7x
topology: tpu7x:2x2x1
jax: 0.10.0
libtpu: 0.0.40
codegen_flags: <defaults>
</compile_context>

<pallas_src>
import math
import functools

import jax
import jax.numpy as jnp
from jax.experimental import pallas as pl
from jax.experimental.pallas import tpu as pltpu


def _gelu_new(x):
    # HF "gelu_new" (tanh approximation), matches ACT2FN["gelu_new"].
    c = math.sqrt(2.0 / math.pi)
    return 0.5 * x * (1.0 + jnp.tanh(c * (x + 0.044715 * x * x * x)))


def _mlp_kernel(x_ref, wfc_ref, bfc_ref, wproj_ref, bproj_ref, o_ref, acc_ref):
    # x_ref:     (tm, nx)       input dtype (cast to bf16 in-kernel)
    # wfc_ref:   (nx, tn)       bf16    bfc_ref:   (1, tn)  f32
    # wproj_ref: (tn, nx)       bf16    bproj_ref: (1, nx)  f32
    # o_ref:     (tm, nx)       out dtype
    # acc_ref:   (tm, nx)       f32 scratch accumulator over the n_state axis
    k = pl.program_id(1)

    @pl.when(k == 0)
    def _():
        acc_ref[...] = jnp.zeros_like(acc_ref)

    x = x_ref[...].astype(jnp.bfloat16)
    # First matmul on the MXU (bf16 inputs, f32 accumulation); bias + gelu in f32.
    h = jnp.dot(x, wfc_ref[...], preferred_element_type=jnp.float32)
    h = _gelu_new(h + bfc_ref[...])
    # Second matmul: cast activation back to bf16 for the MXU, accumulate in f32.
    acc_ref[...] += jnp.dot(h.astype(jnp.bfloat16), wproj_ref[...],
                            preferred_element_type=jnp.float32)

    @pl.when(k == pl.num_programs(1) - 1)
    def _():
        # Dropout(resid_pdrop) is identity in eval mode.
        # TODO(synk): training-mode dropout (pltpu.prng_random_bits mask) not implemented.
        o_ref[...] = (acc_ref[...] + bproj_ref[...]).astype(o_ref.dtype)


@functools.lru_cache(maxsize=1)
def _vmem_capacity_bytes():
    try:
        cap = int(pltpu.get_tpu_info().vmem_capacity_bytes)
        if cap > 0:
            return cap
    except Exception:
        pass
    return 64 << 20  # conservative fallback (v7x size); safe on v5e/v6e too


def _bspec(shape, index_map, bufs=None):
    """BlockSpec with an optional explicit buffer count (fallback if unsupported)."""
    if bufs is None:
        return pl.BlockSpec(shape, index_map)
    try:
        return pl.BlockSpec(shape, index_map, pipeline_mode=pl.Buffered(bufs))
    except TypeError:
        return pl.BlockSpec(shape, index_map)


def prepare_mlp_params(w_fc, b_fc, w_proj, b_proj):
    """One-time parameter prep: bf16 weights, f32 row-vector biases.

    Do this once (e.g. at load time) so the bf16 conversion HBM pass is not
    paid on every forward call.
    """
    return (jnp.asarray(w_fc, jnp.bfloat16),
            jnp.asarray(b_fc, jnp.float32).reshape(1, -1),
            jnp.asarray(w_proj, jnp.bfloat16),
            jnp.asarray(b_proj, jnp.float32).reshape(1, -1))


@functools.partial(jax.jit, static_argnames=("tm", "out_dtype"))
def mlp_forward(x, w_fc_b, b_fc2, w_proj_b, b_proj2, *, tm=256, out_dtype=None):
    """x: [B, S, nx] -> [B, S, nx].  Weights/biases from prepare_mlp_params()."""
    B, S, nx = x.shape
    n_state = w_fc_b.shape[1]
    M = B * S
    out_dtype = out_dtype or x.dtype
    x_bytes = jnp.dtype(x.dtype).itemsize
    out_bytes = jnp.dtype(out_dtype).itemsize

    cap = _vmem_capacity_bytes()
    budget = int(0.85 * cap)

    # ---- Row tile: multiple of 16 (works for f32 and bf16 tiling), <= M. ----
    tm_eff = max(16, (min(tm, M) // 16) * 16)
    # v7x has 2 TensorCores: aim for >= 2 steps on the "parallel" M axis.
    if (M + tm_eff - 1) // tm_eff < 2 and tm_eff >= 32:
        tm_eff = max(16, (tm_eff // 2 // 16) * 16)
    M_pad = ((M + tm_eff - 1) // tm_eff) * tm_eff
    grid_m = M_pad // tm_eff

    # ---- n_state chunk: keep whole weights resident if they fit, else tile. ----
    def _working_set(tn_, k_steps_):
        wbuf_ = 1 if k_steps_ == 1 else 2
        return (2 * tm_eff * nx * x_bytes            # x tiles (double-buffered)
                + 2 * tm_eff * nx * out_bytes        # out tiles (double-buffered)
                + wbuf_ * 2 * nx * tn_ * 2           # W_fc + W_proj slices (bf16)
                + wbuf_ * tn_ * 4 + nx * 4           # biases (f32)
                + tm_eff * nx * 4                    # f32 accumulator scratch
                + 3 * tm_eff * tn_ * 4)              # h / gelu / bf16-recast temps

    tn_eff = n_state
    while (_working_set(tn_eff, n_state // tn_eff) > budget
           and tn_eff > 512
           and tn_eff % 2 == 0
           and (tn_eff // 2) % 128 == 0):
        tn_eff //= 2
    k_steps = n_state // tn_eff
    wbuf = 1 if k_steps == 1 else 2

    ws = _working_set(tn_eff, k_steps)
    vmem_limit = int(min(max(ws + (4 << 20), 32 << 20), int(0.9 * cap)))

    # ---- Pad rows so M divides the tile (padded rows are sliced off). ----
    x2d = x.reshape(M, nx)
    if M_pad != M:
        x2d = jnp.pad(x2d, ((0, M_pad - M), (0, 0)))

    w_reads = grid_m if k_steps > 1 else 1
    cost = pl.CostEstimate(
        flops=4 * M_pad * nx * n_state,               # two matmuls, 2*M*K*N each
        transcendentals=M_pad * n_state,              # tanh in gelu_new
        bytes_accessed=(M_pad * nx * x_bytes
                        + M_pad * nx * out_bytes
                        + w_reads * 2 * nx * n_state * 2
                        + (n_state + nx) * 4),
    )

    out2d = pl.pallas_call(
        _mlp_kernel,
        out_shape=jax.ShapeDtypeStruct((M_pad, nx), out_dtype),
        grid_spec=pltpu.PrefetchScalarGridSpec(
            num_scalar_prefetch=0,
            grid=(grid_m, k_steps),
            in_specs=[
                _bspec((tm_eff, nx), lambda i, k: (i, 0)),                 # x row tile
                _bspec((nx, tn_eff), lambda i, k: (0, k), bufs=wbuf),      # W_fc slice
                _bspec((1, tn_eff), lambda i, k: (0, k), bufs=wbuf),       # b_fc slice
                _bspec((tn_eff, nx), lambda i, k: (k, 0), bufs=wbuf),      # W_proj slice
                _bspec((1, nx), lambda i, k: (0, 0), bufs=1),              # b_proj (const)
            ],
            out_specs=pl.BlockSpec((tm_eff, nx), lambda i, k: (i, 0)),
            scratch_shapes=[pltpu.VMEM((tm_eff, nx), jnp.float32)],
        ),
        compiler_params=pltpu.CompilerParams(
            dimension_semantics=("parallel", "arbitrary"),
            vmem_limit_bytes=vmem_limit,
        ),
        cost_estimate=cost,
    )(x2d, w_fc_b, b_fc2, w_proj_b, b_proj2)

    if M_pad != M:
        out2d = out2d[:M]
    return out2d.reshape(B, S, nx)


def _reference_f32(x, w_fc, b_fc, w_proj, b_proj):
    h = _gelu_new(jnp.einsum("bsn,nm->bsm", x, w_fc) + b_fc)
    return jnp.einsum("bsm,mn->bsn", h, w_proj) + b_proj


if __name__ == "__main__":
    # Small shapes consistent with the module: n_embd (nx) = 128,
    # n_state = 4 * n_embd = 512 (GPT2 default inner size).
    B, S = 2, 8
    nx = 128
    n_state = 4 * nx

    key = jax.random.PRNGKey(0)
    kx, kwf, kbf, kwp, kbp = jax.random.split(key, 5)

    # Conv1D init in HF: weight ~ N(0, 0.02); use deterministic small values.
    x = jax.random.normal(kx, (B, S, nx), dtype=jnp.float32)
    w_fc = 0.02 * jax.random.normal(kwf, (nx, n_state), dtype=jnp.float32)
    b_fc = 0.01 * jax.random.normal(kbf, (n_state,), dtype=jnp.float32)
    w_proj = 0.02 * jax.random.normal(kwp, (n_state, nx), dtype=jnp.float32)
    b_proj = 0.01 * jax.random.normal(kbp, (nx,), dtype=jnp.float32)

    params = prepare_mlp_params(w_fc, b_fc, w_proj, b_proj)
    out = mlp_forward(x, *params)
    out = jax.block_until_ready(out)

    ref = _reference_f32(x, w_fc, b_fc, w_proj, b_proj)
    assert out.shape == (B, S, nx)
    # bf16 matmuls with f32 accumulation vs. full-f32 reference.
    assert jnp.allclose(out, ref, atol=1e-2, rtol=1e-2), "mismatch vs reference"

    print("KERNEL_OK")
</pallas_src>

<mosaic_0001>
module attributes {stable_mosaic.version = 11 : i64} {
  func.func @_mlp_kernel(%arg0: i32, %arg1: i32, %arg2: memref<16x128xf32, #tpu.memory_space<vmem>>, %arg3: memref<128x512xbf16, #tpu.memory_space<vmem>>, %arg4: memref<1x512xf32, #tpu.memory_space<vmem>>, %arg5: memref<512x128xbf16, #tpu.memory_space<vmem>>, %arg6: memref<1x128xf32, #tpu.memory_space<vmem>>, %arg7: memref<16x128xf32, #tpu.memory_space<vmem>>, %arg8: memref<16x128xf32, #tpu.memory_space<vmem>>) attributes {dimension_semantics = [#tpu.dimension_semantics<parallel>, #tpu.dimension_semantics<arbitrary>], iteration_bounds = array<i64: 1, 1>, scalar_prefetch = 0 : i64, scratch_operands = 1 : i64, tpu.core_type = #tpu.core_type<tc>, window_params = [{transform_indices = @transform_0, window_bounds = array<i64: 16, 128>}, {pipeline_mode = #tpu.pipeline_mode<synchronous>, transform_indices = @transform_1, window_bounds = array<i64: 128, 512>}, {pipeline_mode = #tpu.pipeline_mode<synchronous>, transform_indices = @transform_2, window_bounds = array<i64: 1, 512>}, {pipeline_mode = #tpu.pipeline_mode<synchronous>, transform_indices = @transform_3, window_bounds = array<i64: 512, 128>}, {pipeline_mode = #tpu.pipeline_mode<synchronous>, transform_indices = @transform_4, window_bounds = array<i64: 1, 128>}, {transform_indices = @transform_5, window_bounds = array<i64: 16, 128>}]} {
    %c0_i32 = arith.constant 0 : i32
    %0 = arith.cmpi eq, %arg1, %c0_i32 : i32
    %1 = arith.extui %0 : i1 to i32
    %c0_i32_0 = arith.constant 0 : i32
    %2 = arith.cmpi ne, %1, %c0_i32_0 : i32
    scf.if %2 {
      %cst_19 = arith.constant 0.000000e+00 : f32
      %32 = vector.broadcast %cst_19 : f32 to vector<16x128xf32>
      %c0_20 = arith.constant 0 : index
      %c0_21 = arith.constant 0 : index
      %33 = vector.load %arg8[%c0_20, %c0_21] : memref<16x128xf32, #tpu.memory_space<vmem>>, vector<16x128xf32>
      tpu.vector_store %arg8[%c0_20, %c0_21], %32 {strides = array<i32>} : memref<16x128xf32, #tpu.memory_space<vmem>>, vector<16x128xf32>,
    } else {
    }
    %c0 = arith.constant 0 : index
    %c0_1 = arith.constant 0 : index
    %3 = vector.load %arg2[%c0, %c0_1] : memref<16x128xf32, #tpu.memory_space<vmem>>, vector<16x128xf32>
    %4 = arith.truncf %3 : vector<16x128xf32> to vector<16x128xbf16>
    %c0_2 = arith.constant 0 : index
    %c0_3 = arith.constant 0 : index
    %5 = vector.load %arg3[%c0_2, %c0_3] : memref<128x512xbf16, #tpu.memory_space<vmem>>, vector<128x512xbf16>
    %cst = arith.constant dense<0.000000e+00> : vector<16x512xf32>
    %6 = tpu.matmul %4, %5, %cst {dimension_numbers = #tpu.dot_dimension_numbers<[1], [0], [0], [1], [0, 0, 1, 1], [], []>} : vector<16x128xbf16>, vector<128x512xbf16>, vector<16x512xf32> -> vector<16x512xf32>
    %c0_4 = arith.constant 0 : index
    %c0_5 = arith.constant 0 : index
    %7 = vector.load %arg4[%c0_4, %c0_5] : memref<1x512xf32, #tpu.memory_space<vmem>>, vector<1x512xf32>
    %8 = vector.broadcast %7 : vector<1x512xf32> to vector<16x512xf32>
    %9 = arith.addf %6, %8 : vector<16x512xf32>
    %cst_6 = arith.constant 5.000000e-01 : f32
    %10 = vector.broadcast %cst_6 : f32 to vector<16x512xf32>
    %11 = arith.mulf %10, %9 : vector<16x512xf32>
    %cst_7 = arith.constant 4.471500e-02 : f32
    %12 = vector.broadcast %cst_7 : f32 to vector<16x512xf32>
    %13 = arith.mulf %12, %9 : vector<16x512xf32>
    %14 = arith.mulf %13, %9 : vector<16x512xf32>
    %15 = arith.mulf %14, %9 : vector<16x512xf32>
    %16 = arith.addf %9, %15 : vector<16x512xf32>
    %cst_8 = arith.constant 0.797884583 : f32
    %17 = vector.broadcast %cst_8 : f32 to vector<16x512xf32>
    %18 = arith.mulf %17, %16 : vector<16x512xf32>
    %19 = math.tanh %18 : vector<16x512xf32>
    %cst_9 = arith.constant 1.000000e+00 : f32
    %20 = vector.broadcast %cst_9 : f32 to vector<16x512xf32>
    %21 = arith.addf %20, %19 : vector<16x512xf32>
    %22 = arith.mulf %11, %21 : vector<16x512xf32>
    %c0_10 = arith.constant 0 : index
    %c0_11 = arith.constant 0 : index
    %23 = vector.load %arg8[%c0_10, %c0_11] : memref<16x128xf32, #tpu.memory_space<vmem>>, vector<16x128xf32>
    %24 = arith.truncf %22 : vector<16x512xf32> to vector<16x512xbf16>
    %c0_12 = arith.constant 0 : index
    %c0_13 = arith.constant 0 : index
    %25 = vector.load %arg5[%c0_12, %c0_13] : memref<512x128xbf16, #tpu.memory_space<vmem>>, vector<512x128xbf16>
    %cst_14 = arith.constant dense<0.000000e+00> : vector<16x128xf32>
    %26 = tpu.matmul %24, %25, %cst_14 {dimension_numbers = #tpu.dot_dimension_numbers<[1], [0], [0], [1], [0, 0, 1, 1], [], []>} : vector<16x512xbf16>, vector<512x128xbf16>, vector<16x128xf32> -> vector<16x128xf32>
    %27 = arith.addf %23, %26 : vector<16x128xf32>
    %c0_15 = arith.constant 0 : index
    %c0_16 = arith.constant 0 : index
    %28 = vector.load %arg8[%c0_15, %c0_16] : memref<16x128xf32, #tpu.memory_space<vmem>>, vector<16x128xf32>
    tpu.vector_store %arg8[%c0_15, %c0_16], %27 {strides = array<i32>} : memref<16x128xf32, #tpu.memory_space<vmem>>, vector<16x128xf32>,
    %c0_i32_17 = arith.constant 0 : i32
    %29 = arith.cmpi eq, %arg1, %c0_i32_17 : i32
    %30 = arith.extui %29 : i1 to i32
    %c0_i32_18 = arith.constant 0 : i32
    %31 = arith.cmpi ne, %30, %c0_i32_18 : i32
    scf.if %31 {
      %c0_19 = arith.constant 0 : index
      %c0_20 = arith.constant 0 : index
      %32 = vector.load %arg8[%c0_19, %c0_20] : memref<16x128xf32, #tpu.memory_space<vmem>>, vector<16x128xf32>
      %c0_21 = arith.constant 0 : index
      %c0_22 = arith.constant 0 : index
      %33 = vector.load %arg6[%c0_21, %c0_22] : memref<1x128xf32, #tpu.memory_space<vmem>>, vector<1x128xf32>
      %34 = vector.broadcast %33 : vector<1x128xf32> to vector<16x128xf32>
      %35 = arith.addf %32, %34 : vector<16x128xf32>
      %c0_23 = arith.constant 0 : index
      %c0_24 = arith.constant 0 : index
      %36 = vector.load %arg7[%c0_23, %c0_24] : memref<16x128xf32, #tpu.memory_space<vmem>>, vector<16x128xf32>
      tpu.vector_store %arg7[%c0_23, %c0_24], %35 {strides = array<i32>} : memref<16x128xf32, #tpu.memory_space<vmem>>, vector<16x128xf32>,
    } else {
    }
    return
  }
  func.func @transform_0(%arg0: i32, %arg1: i32) -> (i32, i32) {
    %c0_i32 = arith.constant 0 : i32
    %c0_i32_0 = arith.constant 0 : i32
    return %arg0, %c0_i32 : i32, i32
  }
  func.func @transform_1(%arg0: i32, %arg1: i32) -> (i32, i32) {
    %c0_i32 = arith.constant 0 : i32
    %c0_i32_0 = arith.constant 0 : i32
    return %c0_i32, %arg1 : i32, i32
  }
  func.func @transform_2(%arg0: i32, %arg1: i32) -> (i32, i32) {
    %c0_i32 = arith.constant 0 : i32
    %c0_i32_0 = arith.constant 0 : i32
    return %c0_i32, %arg1 : i32, i32
  }
  func.func @transform_3(%arg0: i32, %arg1: i32) -> (i32, i32) {
    %c0_i32 = arith.constant 0 : i32
    %c0_i32_0 = arith.constant 0 : i32
    return %arg1, %c0_i32 : i32, i32
  }
  func.func @transform_4(%arg0: i32, %arg1: i32) -> (i32, i32) {
    %c0_i32 = arith.constant 0 : i32
    %c0_i32_0 = arith.constant 0 : i32
    %c0_i32_1 = arith.constant 0 : i32
    return %c0_i32, %c0_i32_0 : i32, i32
  }
  func.func @transform_5(%arg0: i32, %arg1: i32) -> (i32, i32) {
    %c0_i32 = arith.constant 0 : i32
    %c0_i32_0 = arith.constant 0 : i32
    return %arg0, %c0_i32 : i32, i32
  }
}

</mosaic_0001>

<llo_original>
// kernel: mlp_forward.1
$region0: #{mlp_forward.1}
  #allocation0 [shape = 'u32[]', space=smem, size = 0x4, offset = 0x4, fixed_abs, tag = 'smem constant byte address 0x4 - core index']
  #allocation1 [shape = 'u32[144,128]{1,0:T(1,128)}', space=vmem, size = 0x12000, scoped, tag = 'internal scratch']
  #allocation2 [shape = 'f32[16,128]{1,0:T(8,128)}', space=vmem, size = 0x2000, scoped, tag = 'scratch operand']
  %s0 = inlined_call_operand.hbm [shape: f32[16,128], index: 0, kind: input, shape index: {}]
  %s1 = inlined_call_operand.hbm [shape: bf16[128,512], index: 1, kind: input, shape index: {}]
  %s2 = inlined_call_operand.vmem [shape: f32[1,512], index: 2, kind: input, shape index: {}]
  %s3 = inlined_call_operand.hbm [shape: bf16[512,128], index: 3, kind: input, shape index: {}]
  %s4 = inlined_call_operand.vmem [shape: f32[1,128], index: 4, kind: input, shape index: {}]
  %s5 = inlined_call_operand.hbm [shape: f32[16,128], index: 5, kind: output, shape index: {}]
  %s6 = sld [smem:[#allocation0]]
  $region50: #{mlp_forward.1} parent=0
    _
  %s8 = ssub.s32 1, %s6
  %s9 = scalar_select 0, %s8, %s6
  $region1: #{mlp_forward.1} parent=0
    #allocation3 [shape = 'u8[8192]{0}', space=vmem, size = 0x2000, scoped, tag = 'input window, operand 0, single buffered']
    #allocation4 [shape = 's32[1]{0}', space=sflag, size = 0x4, scoped, tag = 'scoped memory for mlp_forward.1']
    #allocation5 [shape = 's32[1]{0}', space=sflag, size = 0x4, scoped, tag = 'scoped memory for mlp_forward.1']
    #allocation6 [shape = 'u8[131072]{0}', space=vmem, size = 0x20000, scoped, tag = 'input window, operand 1, single buffered']
    #allocation7 [shape = 's32[1]{0}', space=sflag, size = 0x4, scoped, tag = 'scoped memory for mlp_forward.1']
    #allocation8 [shape = 'u8[131072]{0}', space=vmem, size = 0x20000, scoped, tag = 'input window, operand 3, single buffered']
    #allocation9 [shape = 'u8[8192]{0}', space=vmem, size = 0x2000, scoped, tag = 'output window, operand 0, single buffered']
    %10 = vsyncpa [#allocation4], 0
    %11 = vsyncpa [#allocation7], 0
    %12 = vsyncpa [#allocation5], 0
    // Predicated region
    $region2: #{mlp_forward.1} parent=1 // pred_check
      _
    $region3: #{mlp_forward.1} parent=1 // pred_check_branch
      %14 = sbr.rel (0) target = $region5
    $region4: #{mlp_forward.1} parent=1 // pred_region
      %s16 = ssub.s32 256, 256
      %17 = vsyncadd [#allocation4], %s16
      %s18 = sshll.u32 [#allocation3], 4
      %s19 = int_to_ptr.vmem [resolvable:$true] %s18
      %24 = dma.hbm_to_vmem [thread:$0]  %s0, 256, %s19, [#allocation4], 128, 128, 8
    $region5: #{mlp_forward.1} parent=1 // pred_fallthru
      _
    // Predicated region
    $region6: #{mlp_forward.1} parent=1 // pred_check
      _
    $region7: #{mlp_forward.1} parent=1 // pred_check_branch
      %26 = sbr.rel (0) target = $region9
    $region8: #{mlp_forward.1} parent=1 // pred_region
      %s28 = ssub.s32 4096, 4096
      %29 = vsyncadd [#allocation7], %s28
      %s30 = sshll.u32 [#allocation6], 4
      %s31 = int_to_ptr.vmem [resolvable:$true] %s30
      %36 = dma.hbm_to_vmem [thread:$0]  %s1, 4096, %s31, [#allocation7], 256, 256, 16
    $region9: #{mlp_forward.1} parent=1 // pred_fallthru
      _
    // Predicated region
    $region10: #{mlp_forward.1} parent=1 // pred_check
      _
    $region11: #{mlp_forward.1} parent=1 // pred_check_branch
      %38 = sbr.rel (0) target = $region13
    $region12: #{mlp_forward.1} parent=1 // pred_region
      _
    $region13: #{mlp_forward.1} parent=1 // pred_fallthru
      _
    // Predicated region
    $region14: #{mlp_forward.1} parent=1 // pred_check
      _
    $region15: #{mlp_forward.1} parent=1 // pred_check_branch
      %40 = sbr.rel (0) target = $region17
    $region16: #{mlp_forward.1} parent=1 // pred_region
      %s42 = ssub.s32 4096, 4096
      %43 = vsyncadd [#allocation7], %s42
      %s44 = sshll.u32 [#allocation8], 4
      %s45 = int_to_ptr.vmem [resolvable:$true] %s44
      %50 = dma.hbm_to_vmem [thread:$0]  %s3, 4096, %s45, [#allocation7], 64, 64, 4
    $region17: #{mlp_forward.1} parent=1 // pred_fallthru
      _
    // Predicated region
    $region18: #{mlp_forward.1} parent=1 // pred_check
      _
    $region19: #{mlp_forward.1} parent=1 // pred_check_branch
      %52 = sbr.rel (0) target = $region21
    $region20: #{mlp_forward.1} parent=1 // pred_region
      _
    $region21: #{mlp_forward.1} parent=1 // pred_fallthru
      _
    // Predicated region
    $region22: #{mlp_forward.1} parent=1 // pred_check
      _
    $region23: #{mlp_forward.1} parent=1 // pred_check_branch
      %54 = sbr.rel (0) target = $region25
    $region24: #{mlp_forward.1} parent=1 // pred_region
      %55 = dma.done [#allocation4], 256
    $region25: #{mlp_forward.1} parent=1 // pred_fallthru
      _
    // Predicated region
    $region26: #{mlp_forward.1} parent=1 // pred_check
      _
    $region27: #{mlp_forward.1} parent=1 // pred_check_branch
      %57 = sbr.rel (0) target = $region29
    $region28: #{mlp_forward.1} parent=1 // pred_region
      %58 = dma.done [#allocation7], 4096
    $region29: #{mlp_forward.1} parent=1 // pred_fallthru
      _
    // Predicated region
    $region30: #{mlp_forward.1} parent=1 // pred_check
      _
    $region31: #{mlp_forward.1} parent=1 // pred_check_branch
      %60 = sbr.rel (0) target = $region33
    $region32: #{mlp_forward.1} parent=1 // pred_region
      %61 = dma.done [#allocation7], 4096
    $region33: #{mlp_forward.1} parent=1 // pred_fallthru
      _
    %p63 = scmp.eq.s32.totalorder 0, 0
    // Predicated region
    $region34: #{mlp_forward.1} parent=1 // pred_check
      %p64 = pneg %p63
    $region35: #{mlp_forward.1} parent=1 // pred_check_branch
      %66 = sbr.rel (%p64) target = $region37
    $region36: #{mlp_forward.1} parent=1 // pred_region
      %67 = vst [vmem:[#allocation2] sm:$0xff] 0.0
      %68 = vst [vmem:[#allocation2 + $0x8] sm:$0xff] 0.0
    $region37: #{mlp_forward.1} parent=1 // pred_fallthru
      _
    %v69 = vld [vmem:[#allocation3] sm:$0xff]
    %v70 = vld [vmem:[#allocation3 + $0x8] sm:$0xff]
    %v71 = vpack.c.bf16 %v70, %v69
    %v72 = vld [vmem:[#allocation6] sm:$0xff]
    %v73 = vld [vmem:[#allocation6 + $0x8] sm:$0xff]
    %v74 = vld [vmem:[#allocation6 + $0x10] sm:$0xff]
    %v75 = vld [vmem:[#allocation6 + $0x18] sm:$0xff]
    %v76 = vld [vmem:[#allocation6 + $0x20] sm:$0xff]
    %v77 = vld [vmem:[#allocation6 + $0x28] sm:$0xff]
    %v78 = vld [vmem:[#allocation6 + $0x30] sm:$0xff]
    %v79 = vld [vmem:[#allocation6 + $0x38] sm:$0xff]
    %v80 = vld [vmem:[#allocation6 + $0x40] sm:$0xff]
    %v81 = vld [vmem:[#allocation6 + $0x48] sm:$0xff]
    %v82 = vld [vmem:[#allocation6 + $0x50] sm:$0xff]
    %v83 = vld [vmem:[#allocation6 + $0x58] sm:$0xff]
    %v84 = vld [vmem:[#allocation6 + $0x60] sm:$0xff]
    %v85 = vld [vmem:[#allocation6 + $0x68] sm:$0xff]
    %v86 = vld [vmem:[#allocation6 + $0x70] sm:$0xff]
    %v87 = vld [vmem:[#allocation6 + $0x78] sm:$0xff]
    %v88 = vld [vmem:[#allocation6 + $0x80] sm:$0xff]
    %v89 = vld [vmem:[#allocation6 + $0x88] sm:$0xff]
    %v90 = vld [vmem:[#allocation6 + $0x90] sm:$0xff]
    %v91 = vld [vmem:[#allocation6 + $0x98] sm:$0xff]
    %v92 = vld [vmem:[#allocation6 + $0xa0] sm:$0xff]
    %v93 = vld [vmem:[#allocation6 + $0xa8] sm:$0xff]
    %v94 = vld [vmem:[#allocation6 + $0xb0] sm:$0xff]
    %v95 = vld [vmem:[#allocation6 + $0xb8] sm:$0xff]
    %v96 = vld [vmem:[#allocation6 + $0xc0] sm:$0xff]
    %v97 = vld [vmem:[#allocation6 + $0xc8] sm:$0xff]
    %v98 = vld [vmem:[#allocation6 + $0xd0] sm:$0xff]
    %v99 = vld [vmem:[#allocation6 + $0xd8] sm:$0xff]
    %v100 = vld [vmem:[#allocation6 + $0xe0] sm:$0xff]
    %v101 = vld [vmem:[#allocation6 + $0xe8] sm:$0xff]
    %v102 = vld [vmem:[#allocation6 + $0xf0] sm:$0xff]
    %v103 = vld [vmem:[#allocation6 + $0xf8] sm:$0xff]
    %v104 = vld [vmem:[%s2] sm:$0xf]
    %v106 = vlaneseq
    %v107 = vshrl.u32 %v106, 7
    %v108 = vsub.s32 0, %v107
    %v109 = vrot.slane %v104, %v108
    %v110 = vlaneseq
    %v111 = vshrl.u32 %v110, 7
    %v112 = vsub.s32 1, %v111
    %v113 = vrot.slane %v104, %v112
    %v114 = vlaneseq
    %v115 = vshrl.u32 %v114, 7
    %v116 = vsub.s32 2, %v115
    %v117 = vrot.slane %v104, %v116
    %v118 = vlaneseq
    %v119 = vshrl.u32 %v118, 7
    %v120 = vsub.s32 3, %v119
    %v121 = vrot.slane %v104, %v120
    %v158 = vunpack.c.l.b16 %v72
    %v159 = vunpack.c.h.b16 %v72
    %v160 = vunpack.c.l.b16 %v73
    %v161 = vunpack.c.h.b16 %v73
    %v162 = vunpack.c.l.b16 %v74
    %v163 = vunpack.c.h.b16 %v74
    %v164 = vunpack.c.l.b16 %v75
    %v165 = vunpack.c.h.b16 %v75
    %v166 = vunpack.c.l.b16 %v76
    %v167 = vunpack.c.h.b16 %v76
    %v168 = vunpack.c.l.b16 %v77
    %v169 = vunpack.c.h.b16 %v77
    %v170 = vunpack.c.l.b16 %v78
    %v171 = vunpack.c.h.b16 %v78
    %v172 = vunpack.c.l.b16 %v79
    %v173 = vunpack.c.h.b16 %v79
    %v174 = vunpack.c.l.b16 %v80
    %v175 = vunpack.c.h.b16 %v80
    %v176 = vunpack.c.l.b16 %v81
    %v177 = vunpack.c.h.b16 %v81
    %v178 = vunpack.c.l.b16 %v82
    %v179 = vunpack.c.h.b16 %v82
    %v180 = vunpack.c.l.b16 %v83
    %v181 = vunpack.c.h.b16 %v83
    %v182 = vunpack.c.l.b16 %v84
    %v183 = vunpack.c.h.b16 %v84
    %v184 = vunpack.c.l.b16 %v85
    %v185 = vunpack.c.h.b16 %v85
    %v186 = vunpack.c.l.b16 %v86
    %v187 = vunpack.c.h.b16 %v86
    %v188 = vunpack.c.l.b16 %v87
    %v189 = vunpack.c.h.b16 %v87
    %v190 = vunpack.c.l.b16 %v88
    %v191 = vunpack.c.h.b16 %v88
    %v192 = vunpack.c.l.b16 %v89
    %v193 = vunpack.c.h.b16 %v89
    %v194 = vunpack.c.l.b16 %v90
    %v195 = vunpack.c.h.b16 %v90
    %v196 = vunpack.c.l.b16 %v91
    %v197 = vunpack.c.h.b16 %v91
    %v198 = vunpack.c.l.b16 %v92
    %v199 = vunpack.c.h.b16 %v92
    %v200 = vunpack.c.l.b16 %v93
    %v201 = vunpack.c.h.b16 %v93
    %v202 = vunpack.c.l.b16 %v94
    %v203 = vunpack.c.h.b16 %v94
    %v204 = vunpack.c.l.b16 %v95
    %v205 = vunpack.c.h.b16 %v95
    %v206 = vunpack.c.l.b16 %v96
    %v207 = vunpack.c.h.b16 %v96
    %v208 = vunpack.c.l.b16 %v97
    %v209 = vunpack.c.h.b16 %v97
    %v210 = vunpack.c.l.b16 %v98
    %v211 = vunpack.c.h.b16 %v98
    %v212 = vunpack.c.l.b16 %v99
    %v213 = vunpack.c.h.b16 %v99
    %v214 = vunpack.c.l.b16 %v100
    %v215 = vunpack.c.h.b16 %v100
    %v216 = vunpack.c.l.b16 %v101
    %v217 = vunpack.c.h.b16 %v101
    %v218 = vunpack.c.l.b16 %v102
    %v219 = vunpack.c.h.b16 %v102
    %v220 = vunpack.c.l.b16 %v103
    %v221 = vunpack.c.h.b16 %v103
    %v222 = vpack.c.b16 %v162, %v158
    %v223 = vpack.c.b16 %v163, %v159
    %v224 = vpack.c.b16 %v164, %v160
    %v225 = vpack.c.b16 %v165, %v161
    %v226 = vpack.c.b16 %v170, %v166
    %v227 = vpack.c.b16 %v171, %v167
    %v228 = vpack.c.b16 %v172, %v168
    %v229 = vpack.c.b16 %v173, %v169
    %v230 = vpack.c.b16 %v178, %v174
    %v231 = vpack.c.b16 %v179, %v175
    %v232 = vpack.c.b16 %v180, %v176
    %v233 = vpack.c.b16 %v181, %v177
    %v234 = vpack.c.b16 %v186, %v182
    %v235 = vpack.c.b16 %v187, %v183
    %v236 = vpack.c.b16 %v188, %v184
    %v237 = vpack.c.b16 %v189, %v185
    %v238 = vpack.c.b16 %v194, %v190
    %v239 = vpack.c.b16 %v195, %v191
    %v240 = vpack.c.b16 %v196, %v192
    %v241 = vpack.c.b16 %v197, %v193
    %v242 = vpack.c.b16 %v202, %v198
    %v243 = vpack.c.b16 %v203, %v199
    %v244 = vpack.c.b16 %v204, %v200
    %v245 = vpack.c.b16 %v205, %v201
    %v246 = vpack.c.b16 %v210, %v206
    %v247 = vpack.c.b16 %v211, %v207
    %v248 = vpack.c.b16 %v212, %v208
    %v249 = vpack.c.b16 %v213, %v209
    %v250 = vpack.c.b16 %v218, %v214
    %v251 = vpack.c.b16 %v219, %v215
    %v252 = vpack.c.b16 %v220, %v216
    %v253 = vpack.c.b16 %v221, %v217
    %286 = vmatprep.subr.bf16.mxu0 %v223
    %287 = vmatpush1.bf16.msra.mxu0 %v222
    %288 = vmatprep.subr.bf16.mxu0 %v227
    %289 = vmatpush1.bf16.msra.mxu0 %v226
    %290 = vmatprep.subr.bf16.mxu0 %v231
    %291 = vmatpush1.bf16.msra.mxu0 %v230
    %292 = vmatprep.subr.bf16.mxu0 %v235
    %293 = vmatpush1.bf16.msra.mxu0 %v234
    %294 = vmatprep.subr.bf16.mxu0 %v239
    %295 = vmatpush1.bf16.msra.mxu0 %v238
    %296 = vmatprep.subr.bf16.mxu0 %v243
    %297 = vmatpush1.bf16.msra.mxu0 %v242
    %298 = vmatprep.subr.bf16.mxu0 %v247
    %299 = vmatpush1.bf16.msra.mxu0 %v246
    %300 = vmatprep.subr.bf16.mxu0 %v251
    %301 = vmatpush1.bf16.msra.mxu0 %v250
    %302 = vmatprep.subr.bf16.mxu0 0
    %303 = vmatpush1.bf16.msra.mxu0 0
    %304 = vmatprep.subr.bf16.mxu0 0
    %305 = vmatpush1.bf16.msra.mxu0 0
    %306 = vmatprep.subr.bf16.mxu0 0
    %307 = vmatpush1.bf16.msra.mxu0 0
    %308 = vmatprep.subr.bf16.mxu0 0
    %309 = vmatpush1.bf16.msra.mxu0 0
    %310 = vmatprep.subr.bf16.mxu0 0
    %311 = vmatpush1.bf16.msra.mxu0 0
    %312 = vmatprep.subr.bf16.mxu0 0
    %313 = vmatpush1.bf16.msra.mxu0 0
    %314 = vmatprep.subr.bf16.mxu0 0
    %315 = vmatpush1.bf16.msra.mxu0 0
    %316 = vmatprep.subr.bf16.mxu0 0
    %317 = vmatpush1.bf16.msra.mxu0 0
    %318 = vmatprep.mubr.bf16.mxu0 0
    %319 = vmatmul.mubr.bf16.gmra.mrb[0].mxu0 %v71
    %v320 = vpop.f32.mrb[0].mxu0
    %v321 = vadd.f32 %v109, %v320
    %v322 = vpop.f32.mrb[0].mxu0
    %v323 = vadd.f32 %v113, %v322
    %v324 = vpop.f32.mrb[0].mxu0
    %v325 = vadd.f32 %v109, %v324
    %v326 = vpop.f32.mrb[0].mxu0
    %v327 = vadd.f32 %v113, %v326
    %328 = vdwg.mxu0
    %329 = vmatprep.subr.bf16.mxu0 %v225
    %330 = vmatpush1.bf16.msra.mxu0 %v224
    %331 = vmatprep.subr.bf16.mxu0 %v229
    %332 = vmatpush1.bf16.msra.mxu0 %v228
    %333 = vmatprep.subr.bf16.mxu0 %v233
    %334 = vmatpush1.bf16.msra.mxu0 %v232
    %335 = vmatprep.subr.bf16.mxu0 %v237
    %336 = vmatpush1.bf16.msra.mxu0 %v236
    %337 = vmatprep.subr.bf16.mxu0 %v241
    %338 = vmatpush1.bf16.msra.mxu0 %v240
    %339 = vmatprep.subr.bf16.mxu0 %v245
    %340 = vmatpush1.bf16.msra.mxu0 %v244
    %341 = vmatprep.subr.bf16.mxu0 %v249
    %342 = vmatpush1.bf16.msra.mxu0 %v248
    %343 = vmatprep.subr.bf16.mxu0 %v253
    %344 = vmatpush1.bf16.msra.mxu0 %v252
    %345 = vmatprep.subr.bf16.mxu0 0
    %346 = vmatpush1.bf16.msra.mxu0 0
    %347 = vmatprep.subr.bf16.mxu0 0
    %348 = vmatpush1.bf16.msra.mxu0 0
    %349 = vmatprep.subr.bf16.mxu0 0
    %350 = vmatpush1.bf16.msra.mxu0 0
    %351 = vmatprep.subr.bf16.mxu0 0
    %352 = vmatpush1.bf16.msra.mxu0 0
    %353 = vmatprep.subr.bf16.mxu0 0
    %354 = vmatpush1.bf16.msra.mxu0 0
    %355 = vmatprep.subr.bf16.mxu0 0
    %356 = vmatpush1.bf16.msra.mxu0 0
    %357 = vmatprep.subr.bf16.mxu0 0
    %358 = vmatpush1.bf16.msra.mxu0 0
    %359 = vmatprep.subr.bf16.mxu0 0
    %360 = vmatpush1.bf16.msra.mxu0 0
    %361 = vmatprep.mubr.bf16.mxu0 0
    %362 = vmatmul.mubr.bf16.gmra.mrb[0].mxu0 %v71
    %v363 = vpop.f32.mrb[0].mxu0
    %v364 = vadd.f32 %v117, %v363
    %v365 = vpop.f32.mrb[0].mxu0
    %v366 = vadd.f32 %v121, %v365
    %v367 = vpop.f32.mrb[0].mxu0
    %v368 = vadd.f32 %v117, %v367
    %v369 = vpop.f32.mrb[0].mxu0
    %v370 = vadd.f32 %v121, %v369
    %371 = vdwg.mxu0
    %v372 = vmul.f32 %v321, 0.5
    %v373 = vmul.f32 %v323, 0.5
    %v374 = vmul.f32 %v364, 0.5
    %v375 = vmul.f32 %v366, 0.5
    %v376 = vmul.f32 %v325, 0.5
    %v377 = vmul.f32 %v327, 0.5
    %v378 = vmul.f32 %v368, 0.5
    %v379 = vmul.f32 %v370, 0.5
    %v380 = vmul.f32 %v321, 0.044715
    %v381 = vmul.f32 %v323, 0.044715
    %v382 = vmul.f32 %v364, 0.044715
    %v383 = vmul.f32 %v366, 0.044715
    %v384 = vmul.f32 %v325, 0.044715
    %v385 = vmul.f32 %v327, 0.044715
    %v386 = vmul.f32 %v368, 0.044715
    %v387 = vmul.f32 %v370, 0.044715
    %v388 = vmul.f32 %v380, %v321
    %v389 = vmul.f32 %v381, %v323
    %v390 = vmul.f32 %v382, %v364
    %v391 = vmul.f32 %v383, %v366
    %v392 = vmul.f32 %v384, %v325
    %v393 = vmul.f32 %v385, %v327
    %v394 = vmul.f32 %v386, %v368
    %v395 = vmul.f32 %v387, %v370
    %v396 = vmul.f32 %v388, %v321
    %v397 = vmul.f32 %v389, %v323
    %v398 = vmul.f32 %v390, %v364
    %v399 = vmul.f32 %v391, %v366
    %v400 = vmul.f32 %v392, %v325
    %v401 = vmul.f32 %v393, %v327
    %v402 = vmul.f32 %v394, %v368
    %v403 = vmul.f32 %v395, %v370
    %v404 = vadd.f32 %v321, %v396
    %v405 = vadd.f32 %v323, %v397
    %v406 = vadd.f32 %v364, %v398
    %v407 = vadd.f32 %v366, %v399
    %v408 = vadd.f32 %v325, %v400
    %v409 = vadd.f32 %v327, %v401
    %v410 = vadd.f32 %v368, %v402
    %v411 = vadd.f32 %v370, %v403
    %v412 = vmul.f32 %v404, 0.7978846
    %v413 = vmul.f32 %v405, 0.7978846
    %v414 = vmul.f32 %v406, 0.7978846
    %v415 = vmul.f32 %v407, 0.7978846
    %v416 = vmul.f32 %v408, 0.7978846
    %v417 = vmul.f32 %v409, 0.7978846
    %v418 = vmul.f32 %v410, 0.7978846
    %v419 = vmul.f32 %v411, 0.7978846
    %v420 = vtanh.pop %v412
    %v421 = vtanh.pop %v413
    %v422 = vtanh.pop %v414
    %v423 = vtanh.pop %v415
    %v424 = vtanh.pop %v416
    %v425 = vtanh.pop %v417
    %v426 = vtanh.pop %v418
    %v427 = vtanh.pop %v419
    %v428 = vadd.f32 %v420, 1.0
    %v429 = vadd.f32 %v421, 1.0
    %v430 = vadd.f32 %v422, 1.0
    %v431 = vadd.f32 %v423, 1.0
    %v432 = vadd.f32 %v424, 1.0
    %v433 = vadd.f32 %v425, 1.0
    %v434 = vadd.f32 %v426, 1.0
    %v435 = vadd.f32 %v427, 1.0
    %v436 = vmul.f32 %v372, %v428
    %v437 = vmul.f32 %v373, %v429
    %v438 = vmul.f32 %v374, %v430
    %v439 = vmul.f32 %v375, %v431
    %v440 = vmul.f32 %v376, %v432
    %v441 = vmul.f32 %v377, %v433
    %v442 = vmul.f32 %v378, %v434
    %v443 = vmul.f32 %v379, %v435
    %v444 = vld [vmem:[#allocation2] sm:$0xff]
    %v445 = vld [vmem:[#allocation2 + $0x8] sm:$0xff]
    %v446 = vpack.c.bf16 %v440, %v436
    %v447 = vpack.c.bf16 %v441, %v437
    %v448 = vpack.c.bf16 %v442, %v438
    %v449 = vpack.c.bf16 %v443, %v439
    %v450 = vld [vmem:[#allocation8] sm:$0xf]
    %v451 = vld [vmem:[#allocation8 + $0x4] sm:$0xf]
    %v452 = vld [vmem:[#allocation8 + $0x8] sm:$0xf]
    %v453 = vld [vmem:[#allocation8 + $0xc] sm:$0xf]
    %v454 = vld [vmem:[#allocation8 + $0x10] sm:$0xf]
    %v455 = vld [vmem:[#allocation8 + $0x14] sm:$0xf]
    %v456 = vld [vmem:[#allocation8 + $0x18] sm:$0xf]
    %v457 = vld [vmem:[#allocation8 + $0x1c] sm:$0xf]
    %v458 = vld [vmem:[#allocation8 + $0x20] sm:$0xf]
    %v459 = vld [vmem:[#allocation8 + $0x24] sm:$0xf]
    %v460 = vld [vmem:[#allocation8 + $0x28] sm:$0xf]
    %v461 = vld [vmem:[#allocation8 + $0x2c] sm:$0xf]
    %v462 = vld [vmem:[#allocation8 + $0x30] sm:$0xf]
    %v463 = vld [vmem:[#allocation8 + $0x34] sm:$0xf]
    %v464 = vld [vmem:[#allocation8 + $0x38] sm:$0xf]
    %v465 = vld [vmem:[#allocation8 + $0x3c] sm:$0xf]
    %v466 = vld [vmem:[#allocation8 + $0x40] sm:$0xf]
    %v467 = vld [vmem:[#allocation8 + $0x44] sm:$0xf]
    %v468 = vld [vmem:[#allocation8 + $0x48] sm:$0xf]
    %v469 = vld [vmem:[#allocation8 + $0x4c] sm:$0xf]
    %v470 = vld [vmem:[#allocation8 + $0x50] sm:$0xf]
    %v471 = vld [vmem:[#allocation8 + $0x54] sm:$0xf]
    %v472 = vld [vmem:[#allocation8 + $0x58] sm:$0xf]
    %v473 = vld [vmem:[#allocation8 + $0x5c] sm:$0xf]
    %v474 = vld [vmem:[#allocation8 + $0x60] sm:$0xf]
    %v475 = vld [vmem:[#allocation8 + $0x64] sm:$0xf]
    %v476 = vld [vmem:[#allocation8 + $0x68] sm:$0xf]
    %v477 = vld [vmem:[#allocation8 + $0x6c] sm:$0xf]
    %v478 = vld [vmem:[#allocation8 + $0x70] sm:$0xf]
    %v479 = vld [vmem:[#allocation8 + $0x74] sm:$0xf]
    %v480 = vld [vmem:[#allocation8 + $0x78] sm:$0xf]
    %v481 = vld [vmem:[#allocation8 + $0x7c] sm:$0xf]
    %v482 = vld [vmem:[#allocation8 + $0x80] sm:$0xf]
    %v483 = vld [vmem:[#allocation8 + $0x84] sm:$0xf]
    %v484 = vld [vmem:[#allocation8 + $0x88] sm:$0xf]
    %v485 = vld [vmem:[#allocation8 + $0x8c] sm:$0xf]
    %v486 = vld [vmem:[#allocation8 + $0x90] sm:$0xf]
    %v487 = vld [vmem:[#allocation8 + $0x94] sm:$0xf]
    %v488 = vld [vmem:[#allocation8 + $0x98] sm:$0xf]
    %v489 = vld [vmem:[#allocation8 + $0x9c] sm:$0xf]
    %v490 = vld [vmem:[#allocation8 + $0xa0] sm:$0xf]
    %v491 = vld [vmem:[#allocation8 + $0xa4] sm:$0xf]
    %v492 = vld [vmem:[#allocation8 + $0xa8] sm:$0xf]
    %v493 = vld [vmem:[#allocation8 + $0xac] sm:$0xf]
    %v494 = vld [vmem:[#allocation8 + $0xb0] sm:$0xf]
    %v495 = vld [vmem:[#allocation8 + $0xb4] sm:$0xf]
    %v496 = vld [vmem:[#allocation8 + $0xb8] sm:$0xf]
    %v497 = vld [vmem:[#allocation8 + $0xbc] sm:$0xf]
    %v498 = vld [vmem:[#allocation8 + $0xc0] sm:$0xf]
    %v499 = vld [vmem:[#allocation8 + $0xc4] sm:$0xf]
    %v500 = vld [vmem:[#allocation8 + $0xc8] sm:$0xf]
    %v501 = vld [vmem:[#allocation8 + $0xcc] sm:$0xf]
    %v502 = vld [vmem:[#allocation8 + $0xd0] sm:$0xf]
    %v503 = vld [vmem:[#allocation8 + $0xd4] sm:$0xf]
    %v504 = vld [vmem:[#allocation8 + $0xd8] sm:$0xf]
    %v505 = vld [vmem:[#allocation8 + $0xdc] sm:$0xf]
    %v506 = vld [vmem:[#allocation8 + $0xe0] sm:$0xf]
    %v507 = vld [vmem:[#allocation8 + $0xe4] sm:$0xf]
    %v508 = vld [vmem:[#allocation8 + $0xe8] sm:$0xf]
    %v509 = vld [vmem:[#allocation8 + $0xec] sm:$0xf]
    %v510 = vld [vmem:[#allocation8 + $0xf0] sm:$0xf]
    %v511 = vld [vmem:[#allocation8 + $0xf4] sm:$0xf]
    %v512 = vld [vmem:[#allocation8 + $0xf8] sm:$0xf]
    %v513 = vld [vmem:[#allocation8 + $0xfc] sm:$0xf]
    %v578 = vunpack.c.l.b16 %v450
    %v579 = vunpack.c.l.b16 %v451
    %v580 = vunpack.c.l.b16 %v452
    %v581 = vunpack.c.l.b16 %v453
    %v582 = vunpack.c.l.b16 %v454
    %v583 = vunpack.c.l.b16 %v455
    %v584 = vunpack.c.l.b16 %v456
    %v585 = vunpack.c.l.b16 %v457
    %v586 = vunpack.c.l.b16 %v458
    %v587 = vunpack.c.l.b16 %v459
    %v588 = vunpack.c.l.b16 %v460
    %v589 = vunpack.c.l.b16 %v461
    %v590 = vunpack.c.l.b16 %v462
    %v591 = vunpack.c.l.b16 %v463
    %v592 = vunpack.c.l.b16 %v464
    %v593 = vunpack.c.l.b16 %v465
    %v594 = vunpack.c.l.b16 %v466
    %v595 = vunpack.c.l.b16 %v467
    %v596 = vunpack.c.l.b16 %v468
    %v597 = vunpack.c.l.b16 %v469
    %v598 = vunpack.c.l.b16 %v470
    %v599 = vunpack.c.l.b16 %v471
    %v600 = vunpack.c.l.b16 %v472
    %v601 = vunpack.c.l.b16 %v473
    %v602 = vunpack.c.l.b16 %v474
    %v603 = vunpack.c.l.b16 %v475
    %v604 = vunpack.c.l.b16 %v476
    %v605 = vunpack.c.l.b16 %v477
    %v606 = vunpack.c.l.b16 %v478
    %v607 = vunpack.c.l.b16 %v479
    %v608 = vunpack.c.l.b16 %v480
    %v609 = vunpack.c.l.b16 %v481
    %v610 = vunpack.c.l.b16 %v482
    %v611 = vunpack.c.l.b16 %v483
    %v612 = vunpack.c.l.b16 %v484
    %v613 = vunpack.c.l.b16 %v485
    %v614 = vunpack.c.l.b16 %v486
    %v615 = vunpack.c.l.b16 %v487
    %v616 = vunpack.c.l.b16 %v488
    %v617 = vunpack.c.l.b16 %v489
    %v618 = vunpack.c.l.b16 %v490
    %v619 = vunpack.c.l.b16 %v491
    %v620 = vunpack.c.l.b16 %v492
    %v621 = vunpack.c.l.b16 %v493
    %v622 = vunpack.c.l.b16 %v494
    %v623 = vunpack.c.l.b16 %v495
    %v624 = vunpack.c.l.b16 %v496
    %v625 = vunpack.c.l.b16 %v497
    %v626 = vunpack.c.l.b16 %v498
    %v627 = vunpack.c.l.b16 %v499
    %v628 = vunpack.c.l.b16 %v500
    %v629 = vunpack.c.l.b16 %v501
    %v630 = vunpack.c.l.b16 %v502
    %v631 = vunpack.c.l.b16 %v503
    %v632 = vunpack.c.l.b16 %v504
    %v633 = vunpack.c.l.b16 %v505
    %v634 = vunpack.c.l.b16 %v506
    %v635 = vunpack.c.l.b16 %v507
    %v636 = vunpack.c.l.b16 %v508
    %v637 = vunpack.c.l.b16 %v509
    %v638 = vunpack.c.l.b16 %v510
    %v639 = vunpack.c.l.b16 %v511
    %v640 = vunpack.c.l.b16 %v512
    %v641 = vunpack.c.l.b16 %v513
    %v642 = vpack.c.b16 %v579, %v578
    %v643 = vpack.c.b16 %v581, %v580
    %v644 = vpack.c.b16 %v583, %v582
    %v645 = vpack.c.b16 %v585, %v584
    %v646 = vpack.c.b16 %v587, %v586
    %v647 = vpack.c.b16 %v589, %v588
    %v648 = vpack.c.b16 %v591, %v590
    %v649 = vpack.c.b16 %v593, %v592
    %v650 = vpack.c.b16 %v595, %v594
    %v651 = vpack.c.b16 %v597, %v596
    %v652 = vpack.c.b16 %v599, %v598
    %v653 = vpack.c.b16 %v601, %v600
    %v654 = vpack.c.b16 %v603, %v602
    %v655 = vpack.c.b16 %v605, %v604
    %v656 = vpack.c.b16 %v607, %v606
    %v657 = vpack.c.b16 %v609, %v608
    %v658 = vpack.c.b16 %v611, %v610
    %v659 = vpack.c.b16 %v613, %v612
    %v660 = vpack.c.b16 %v615, %v614
    %v661 = vpack.c.b16 %v617, %v616
    %v662 = vpack.c.b16 %v619, %v618
    %v663 = vpack.c.b16 %v621, %v620
    %v664 = vpack.c.b16 %v623, %v622
    %v665 = vpack.c.b16 %v625, %v624
    %v666 = vpack.c.b16 %v627, %v626
    %v667 = vpack.c.b16 %v629, %v628
    %v668 = vpack.c.b16 %v631, %v630
    %v669 = vpack.c.b16 %v633, %v632
    %v670 = vpack.c.b16 %v635, %v634
    %v671 = vpack.c.b16 %v637, %v636
    %v672 = vpack.c.b16 %v639, %v638
    %v673 = vpack.c.b16 %v641, %v640
    %706 = vmatprep.subr.bf16.mxu0 0
    %707 = vmatpush1.bf16.msra.mxu0 %v642
    %708 = vmatprep.subr.bf16.mxu0 0
    %709 = vmatpush1.bf16.msra.mxu0 %v643
    %710 = vmatprep.subr.bf16.mxu0 0
    %711 = vmatpush1.bf16.msra.mxu0 %v644
    %712 = vmatprep.subr.bf16.mxu0 0
    %713 = vmatpush1.bf16.msra.mxu0 %v645
    %714 = vmatprep.subr.bf16.mxu0 0
    %715 = vmatpush1.bf16.msra.mxu0 %v646
    %716 = vmatprep.subr.bf16.mxu0 0
    %717 = vmatpush1.bf16.msra.mxu0 %v647
    %718 = vmatprep.subr.bf16.mxu0 0
    %719 = vmatpush1.bf16.msra.mxu0 %v648
    %720 = vmatprep.subr.bf16.mxu0 0
    %721 = vmatpush1.bf16.msra.mxu0 %v649
    %722 = vmatprep.subr.bf16.mxu0 0
    %723 = vmatpush1.bf16.msra.mxu0 %v650
    %724 = vmatprep.subr.bf16.mxu0 0
    %725 = vmatpush1.bf16.msra.mxu0 %v651
    %726 = vmatprep.subr.bf16.mxu0 0
    %727 = vmatpush1.bf16.msra.mxu0 %v652
    %728 = vmatprep.subr.bf16.mxu0 0
    %729 = vmatpush1.bf16.msra.mxu0 %v653
    %730 = vmatprep.subr.bf16.mxu0 0
    %731 = vmatpush1.bf16.msra.mxu0 %v654
    %732 = vmatprep.subr.bf16.mxu0 0
    %733 = vmatpush1.bf16.msra.mxu0 %v655
    %734 = vmatprep.subr.bf16.mxu0 0
    %735 = vmatpush1.bf16.msra.mxu0 %v656
    %736 = vmatprep.subr.bf16.mxu0 0
    %737 = vmatpush1.bf16.msra.mxu0 %v657
    %738 = vmatprep.mubr.bf16.mxu0 %v447
    %739 = vmatmul.mubr.bf16.gmra.mrb[0].mxu0 %v446
    %v740 = vpop.f32.mrb[0].mxu0
    %v741 = vadd.f32 0.0, %v740
    %v742 = vpop.f32.mrb[0].mxu0
    %v743 = vpop.f32.mrb[0].mxu0
    %v744 = vadd.f32 0.0, %v743
    %v745 = vpop.f32.mrb[0].mxu0
    %746 = vdwg.mxu0
    %747 = vmatprep.subr.bf16.mxu0 0
    %748 = vmatpush1.bf16.msra.mxu0 %v658
    %749 = vmatprep.subr.bf16.mxu0 0
    %750 = vmatpush1.bf16.msra.mxu0 %v659
    %751 = vmatprep.subr.bf16.mxu0 0
    %752 = vmatpush1.bf16.msra.mxu0 %v660
    %753 = vmatprep.subr.bf16.mxu0 0
    %754 = vmatpush1.bf16.msra.mxu0 %v661
    %755 = vmatprep.subr.bf16.mxu0 0
    %756 = vmatpush1.bf16.msra.mxu0 %v662
    %757 = vmatprep.subr.bf16.mxu0 0
    %758 = vmatpush1.bf16.msra.mxu0 %v663
    %759 = vmatprep.subr.bf16.mxu0 0
    %760 = vmatpush1.bf16.msra.mxu0 %v664
    %761 = vmatprep.subr.bf16.mxu0 0
    %762 = vmatpush1.bf16.msra.mxu0 %v665
    %763 = vmatprep.subr.bf16.mxu0 0
    %764 = vmatpush1.bf16.msra.mxu0 %v666
    %765 = vmatprep.subr.bf16.mxu0 0
    %766 = vmatpush1.bf16.msra.mxu0 %v667
    %767 = vmatprep.subr.bf16.mxu0 0
    %768 = vmatpush1.bf16.msra.mxu0 %v668
    %769 = vmatprep.subr.bf16.mxu0 0
    %770 = vmatpush1.bf16.msra.mxu0 %v669
    %771 = vmatprep.subr.bf16.mxu0 0
    %772 = vmatpush1.bf16.msra.mxu0 %v670
    %773 = vmatprep.subr.bf16.mxu0 0
    %774 = vmatpush1.bf16.msra.mxu0 %v671
    %775 = vmatprep.subr.bf16.mxu0 0
    %776 = vmatpush1.bf16.msra.mxu0 %v672
    %777 = vmatprep.subr.bf16.mxu0 0
    %778 = vmatpush1.bf16.msra.mxu0 %v673
    %779 = vmatprep.mubr.bf16.mxu0 %v449
    %780 = vmatmul.mubr.bf16.gmra.mrb[0].mxu0 %v448
    %v781 = vpop.f32.mrb[0].mxu0
    %v782 = vadd.f32 %v741, %v781
    %v783 = vpop.f32.mrb[0].mxu0
    %v784 = vpop.f32.mrb[0].mxu0
    %v785 = vadd.f32 %v744, %v784
    %v786 = vpop.f32.mrb[0].mxu0
    %787 = vdwg.mxu0
    %v788 = vadd.f32 %v444, %v782
    %v789 = vadd.f32 %v445, %v785
    %790 = vst [vmem:[#allocation2] sm:$0xff] %v788
    %791 = vst [vmem:[#allocation2 + $0x8] sm:$0xff] %v789
    // Predicated region
    $region38: #{mlp_forward.1} parent=1 // pred_check
      %p792 = pneg %p63
    $region39: #{mlp_forward.1} parent=1 // pred_check_branch
      %794 = sbr.rel (%p792) target = $region41
    $region40: #{mlp_forward.1} parent=1 // pred_region
      %v795 = vld [vmem:[#allocation2] sm:$0xff]
      %v796 = vld [vmem:[#allocation2 + $0x8] sm:$0xff]
      %v797 = vld [vmem:[%s4] sm:$0x1]
      %v799 = vlaneseq
      %v800 = vshrl.u32 %v799, 7
      %v801 = vsub.s32 0, %v800
      %v802 = vrot.slane %v797, %v801
      %v804 = vadd.f32 %v795, %v802
      %v805 = vadd.f32 %v796, %v802
      %806 = vst [vmem:[#allocation9] sm:$0xff] %v804
      %807 = vst [vmem:[#allocation9 + $0x8] sm:$0xff] %v805
    $region41: #{mlp_forward.1} parent=1 // pred_fallthru
      _
    // Predicated region
    $region42: #{mlp_forward.1} parent=1 // pred_check
      _
    $region43: #{mlp_forward.1} parent=1 // pred_check_branch
      %809 = sbr.rel (0) target = $region45
    $region44: #{mlp_forward.1} parent=1 // pred_region
      %s811 = ssub.s32 256, 256
      %812 = vsyncadd [#allocation5], %s811
      %s813 = sshll.u32 [#allocation9], 4
      %s814 = int_to_ptr.vmem [resolvable:$true] %s813
      %819 = dma.vmem_to_hbm [thread:$0]  %s814, 256, %s5, [#allocation5], 128, 128, 8
    $region45: #{mlp_forward.1} parent=1 // pred_fallthru
      _
    // Predicated region
    $region46: #{mlp_forward.1} parent=1 // pred_check
      _
    $region47: #{mlp_forward.1} parent=1 // pred_check_branch
      %821 = sbr.rel (0) target = $region49
    $region48: #{mlp_forward.1} parent=1 // pred_region
      %822 = dma.done [#allocation5], 256
    $region49: #{mlp_forward.1} parent=1 // pred_fallthru
      _
    %823 = vsyncpa [#allocation4], 1
    %824 = vsyncpa [#allocation7], 1
    %825 = vsyncpa [#allocation5], 1

</llo_original>
